<compile_context>
chip_gen: v7x
topology: tpu7x:2x2x1
jax: 0.10.0
libtpu: 0.0.40
codegen_flags: <defaults>
</compile_context>

<pallas_src>
import functools

import jax
import jax.numpy as jnp
from jax.experimental import pallas as pl
from jax.experimental.pallas import tpu as pltpu

_LN_EPS = 1e-5   # nn.LayerNorm default eps
_LANES = 128


def _round_up(n, m):
    return ((n + m - 1) // m) * m


def _layernorm(h, gamma, beta):
    mean = jnp.mean(h, axis=-1, keepdims=True)
    centered = h - mean
    var = jnp.mean(centered * centered, axis=-1, keepdims=True)
    inv = jax.lax.rsqrt(var + _LN_EPS)
    return centered * inv * gamma + beta


def actor_kernel(x_ref,
                 w1_ref, b1_ref, g1_ref, be1_ref,
                 w2_ref, b2_ref, g2_ref, be2_ref,
                 wmu_ref, bmu_ref,
                 o_ref,
                 *, last_block, last_local):
    # Matmul dtype follows the stored weight dtype (f32 by default; bf16 only
    # if the caller pre-cast the weights once with cast_weights()).  x streams
    # in as f32 and is cast here on the VPU -- no wrapper convert pre-pass.
    mm = w1_ref.dtype

    # fc1 -> LayerNorm -> relu   (f32 accumulation; LN / relu stay f32)
    h1 = jnp.dot(x_ref[...].astype(mm), w1_ref[...],
                 preferred_element_type=jnp.float32) + b1_ref[...]
    h1 = jnp.maximum(_layernorm(h1, g1_ref[...], be1_ref[...]), 0.0)

    # fc2 -> LayerNorm -> relu
    h2 = jnp.dot(h1.astype(w2_ref.dtype), w2_ref[...],
                 preferred_element_type=jnp.float32) + b2_ref[...]
    h2 = jnp.maximum(_layernorm(h2, g2_ref[...], be2_ref[...]), 0.0)

    # mu -> tanh   (output lanes zero-padded to a multiple of 128 -> the extra
    # lanes hold tanh(0) = 0 and are sliced off in the wrapper)
    y = jnp.tanh(jnp.dot(h2.astype(wmu_ref.dtype), wmu_ref[...],
                         preferred_element_type=jnp.float32) + bmu_ref[...])

    o_ref[...] = y.astype(o_ref.dtype)

    # torch.cat([tanh(.)[:-1], tanh(.)[-1:] * 0.6]): only the grid block that
    # owns the global last row rewrites that single row, scaled by 0.6.
    @pl.when(pl.program_id(0) == last_block)
    def _():
        o_ref[last_local:last_local + 1, :] = (
            y[last_local:last_local + 1, :] * 0.6).astype(o_ref.dtype)


@functools.partial(jax.jit, static_argnames=("block_rows",))
def actor_forward(x, params, *, block_rows=2048):
    (w1, b1, g1, be1, w2, b2, g2, be2, wmu, bmu) = params
    B, in_size = x.shape
    fc1_dims = w1.shape[1]
    fc2_dims = w2.shape[1]
    out_size = wmu.shape[1]

    # Lane-dense output: zero-pad mu's weight/bias columns to 128 lanes so the
    # kernel's stores and the output writeback DMA use full vregs.  (Tiny
    # [fc2, out] tensors -- negligible vs streaming x.)
    out_pad = _round_up(out_size, _LANES)
    wmu_p = jnp.pad(wmu, ((0, 0), (0, out_pad - out_size)))
    bmu_p = jnp.pad(bmu, ((0, 0), (0, out_pad - out_size)))

    # Row tiling: big tiles (per-grid-step overhead ~0.35us).  Weights stay
    # VMEM-resident, so VMEM use is just 2 double-buffered x/out tiles.
    TB = min(_round_up(block_rows, 8), _round_up(B, 8))
    num_blocks = pl.cdiv(B, TB)
    # v7x only: for a large batch that landed on a single block, split it so
    # both TensorCores receive row blocks (harmless on v5e/v6e's single TC).
    if num_blocks == 1 and B > 1024:
        TB = _round_up(pl.cdiv(B, 2), 8)
        num_blocks = pl.cdiv(B, TB)
    last_block = num_blocks - 1
    last_local = (B - 1) - last_block * TB   # global last row within its block

    def row_spec(feat):
        return pl.BlockSpec((TB, feat), lambda i: (i, 0))

    def resident_spec(a):
        # Constant block index -> DMA'd once, VMEM-resident across the grid.
        return pl.BlockSpec(a.shape, lambda i: (0, 0))

    args = (x, w1, b1, g1, be1, w2, b2, g2, be2, wmu_p, bmu_p)
    in_specs = [row_spec(in_size)] + [resident_spec(a) for a in args[1:]]

    kernel = functools.partial(actor_kernel,
                               last_block=last_block, last_local=last_local)

    param_bytes = sum(int(a.size) * a.dtype.itemsize for a in args[1:])
    cost = pl.CostEstimate(
        flops=2 * B * (in_size * fc1_dims
                       + fc1_dims * fc2_dims
                       + fc2_dims * out_pad),
        transcendentals=B * (fc1_dims + fc2_dims + out_pad),
        bytes_accessed=(int(x.size) * x.dtype.itemsize
                        + param_bytes
                        + B * out_pad * 4),
    )

    out = pl.pallas_call(
        kernel,
        out_shape=jax.ShapeDtypeStruct((B, out_pad), jnp.float32),
        grid=(num_blocks,),
        in_specs=in_specs,
        out_specs=row_spec(out_pad),
        compiler_params=pltpu.CompilerParams(
            dimension_semantics=("parallel",)),
        cost_estimate=cost,
    )(*args)

    return out[:, :out_size]


def cast_weights(params, dtype=jnp.bfloat16):
    """Optionally store the matmul weights in `dtype` ONCE (offline).

    Biases and LayerNorm params stay f32 so all VPU/EUP math (LayerNorm,
    relu, tanh) remains f32.  The kernel picks up the matmul dtype from the
    stored weight dtype; no per-call casts happen in the wrapper.
    """
    (w1, b1, g1, be1, w2, b2, g2, be2, wmu, bmu) = params
    return (w1.astype(dtype), b1, g1, be1,
            w2.astype(dtype), b2, g2, be2,
            wmu.astype(dtype), bmu)


def init_params(key, in_size, fc1_dims, fc2_dims, out_size):
    """Deterministic init mirroring the module's __init__ (uniform ranges)."""
    k1w, k1b, k2w, k2b, k3w, k3b = jax.random.split(key, 6)
    # PyTorch nn.Linear weight is [out, in]; the module uses
    # 1/sqrt(weight.size(0)) = 1/sqrt(out_features) as the uniform bound.
    # We store W transposed to [in, out] for the kernel.
    f1 = 1.0 / jnp.sqrt(jnp.float32(fc1_dims))
    f2 = 1.0 / jnp.sqrt(jnp.float32(fc2_dims))
    f3 = 0.003

    w1 = jax.random.uniform(k1w, (in_size, fc1_dims), jnp.float32, -f1, f1)
    b1 = jax.random.uniform(k1b, (1, fc1_dims), jnp.float32, -f1, f1)
    w2 = jax.random.uniform(k2w, (fc1_dims, fc2_dims), jnp.float32, -f2, f2)
    b2 = jax.random.uniform(k2b, (1, fc2_dims), jnp.float32, -f2, f2)
    wmu = jax.random.uniform(k3w, (fc2_dims, out_size), jnp.float32, -f3, f3)
    bmu = jax.random.uniform(k3b, (1, out_size), jnp.float32, -f3, f3)

    # LayerNorm affine params: defaults weight=1, bias=0.
    g1 = jnp.ones((1, fc1_dims), jnp.float32)
    be1 = jnp.zeros((1, fc1_dims), jnp.float32)
    g2 = jnp.ones((1, fc2_dims), jnp.float32)
    be2 = jnp.zeros((1, fc2_dims), jnp.float32)

    return (w1, b1, g1, be1, w2, b2, g2, be2, wmu, bmu)


def _reference(x, params):
    """Pure-JAX f32 reference matching the PyTorch forward."""
    (w1, b1, g1, be1, w2, b2, g2, be2, wmu, bmu) = params
    h1 = jnp.maximum(_layernorm(x @ w1 + b1, g1, be1), 0.0)
    h2 = jnp.maximum(_layernorm(h1 @ w2 + b2, g2, be2), 0.0)
    y = jnp.tanh(h2 @ wmu + bmu)
    return jnp.concatenate([y[:-1, :], y[-1:, :] * 0.6], axis=0)


if __name__ == "__main__":
    key = jax.random.PRNGKey(0)
    kx1, kx2, kp = jax.random.split(key, 3)

    # Small shapes consistent with the module: batched 2-D observations.
    in_size, fc1_dims, fc2_dims, out_size = 16, 64, 32, 8
    params = init_params(kp, in_size, fc1_dims, fc2_dims, out_size)

    # 1) Small batch, single row block, exact f32 path -> tight tolerance.
    x_small = jax.random.normal(kx1, (8, in_size), jnp.float32)
    ref_small = _reference(x_small, params)
    out_small = jax.block_until_ready(actor_forward(x_small, params))
    assert out_small.shape == (8, out_size)
    assert jnp.allclose(out_small, ref_small, atol=1e-5, rtol=1e-5), \
        "f32 single-block mismatch"

    # 2) Multi-block grid with a partial last block: exercises the pipelined
    #    row tiling, clipped writeback, and the last-row *0.6 under pl.when.
    x_big = jax.random.normal(kx2, (300, in_size), jnp.float32)
    ref_big = _reference(x_big, params)
    out_big = jax.block_until_ready(
        actor_forward(x_big, params, block_rows=128))
    assert out_big.shape == (300, out_size)
    assert jnp.allclose(out_big, ref_big, atol=1e-5, rtol=1e-5), \
        "f32 multi-block mismatch"

    # 3) Optional bf16 weight storage (cast once, outside the forward pass).
    params_bf16 = cast_weights(params, jnp.bfloat16)
    out_bf16 = jax.block_until_ready(actor_forward(x_small, params_bf16))
    assert out_bf16.shape == (8, out_size)
    assert jnp.allclose(out_bf16, ref_small, atol=5e-3, rtol=5e-2), \
        "bf16 mismatch"

    print("KERNEL_OK")
</pallas_src>

<mosaic_0001>
module attributes {stable_mosaic.version = 11 : i64} {
  func.func @actor_kernel(%arg0: i32, %arg1: memref<8x16xf32, #tpu.memory_space<vmem>>, %arg2: memref<16x64xf32, #tpu.memory_space<vmem>>, %arg3: memref<1x64xf32, #tpu.memory_space<vmem>>, %arg4: memref<1x64xf32, #tpu.memory_space<vmem>>, %arg5: memref<1x64xf32, #tpu.memory_space<vmem>>, %arg6: memref<64x32xf32, #tpu.memory_space<vmem>>, %arg7: memref<1x32xf32, #tpu.memory_space<vmem>>, %arg8: memref<1x32xf32, #tpu.memory_space<vmem>>, %arg9: memref<1x32xf32, #tpu.memory_space<vmem>>, %arg10: memref<32x128xf32, #tpu.memory_space<vmem>>, %arg11: memref<1x128xf32, #tpu.memory_space<vmem>>, %arg12: memref<8x128xf32, #tpu.memory_space<vmem>>) attributes {dimension_semantics = [#tpu.dimension_semantics<parallel>], iteration_bounds = array<i64: 1>, scalar_prefetch = 0 : i64, scratch_operands = 0 : i64, tpu.core_type = #tpu.core_type<tc>, window_params = [{transform_indices = @transform_0, window_bounds = array<i64: 8, 16>}, {pipeline_mode = #tpu.pipeline_mode<synchronous>, transform_indices = @transform_1, window_bounds = array<i64: 16, 64>}, {pipeline_mode = #tpu.pipeline_mode<synchronous>, transform_indices = @transform_2, window_bounds = array<i64: 1, 64>}, {pipeline_mode = #tpu.pipeline_mode<synchronous>, transform_indices = @transform_3, window_bounds = array<i64: 1, 64>}, {pipeline_mode = #tpu.pipeline_mode<synchronous>, transform_indices = @transform_4, window_bounds = array<i64: 1, 64>}, {pipeline_mode = #tpu.pipeline_mode<synchronous>, transform_indices = @transform_5, window_bounds = array<i64: 64, 32>}, {pipeline_mode = #tpu.pipeline_mode<synchronous>, transform_indices = @transform_6, window_bounds = array<i64: 1, 32>}, {pipeline_mode = #tpu.pipeline_mode<synchronous>, transform_indices = @transform_7, window_bounds = array<i64: 1, 32>}, {pipeline_mode = #tpu.pipeline_mode<synchronous>, transform_indices = @transform_8, window_bounds = array<i64: 1, 32>}, {pipeline_mode = #tpu.pipeline_mode<synchronous>, transform_indices = @transform_9, window_bounds = array<i64: 32, 128>}, {pipeline_mode = #tpu.pipeline_mode<synchronous>, transform_indices = @transform_10, window_bounds = array<i64: 1, 128>}, {transform_indices = @transform_11, window_bounds = array<i64: 8, 128>}]} {
    %c0 = arith.constant 0 : index
    %c0_0 = arith.constant 0 : index
    %0 = vector.load %arg1[%c0, %c0_0] : memref<8x16xf32, #tpu.memory_space<vmem>>, vector<8x16xf32>
    %c0_1 = arith.constant 0 : index
    %c0_2 = arith.constant 0 : index
    %1 = vector.load %arg2[%c0_1, %c0_2] : memref<16x64xf32, #tpu.memory_space<vmem>>, vector<16x64xf32>
    %cst = arith.constant dense<0.000000e+00> : vector<8x64xf32>
    %2 = tpu.matmul %0, %1, %cst {dimension_numbers = #tpu.dot_dimension_numbers<[1], [0], [0], [1], [0, 0, 1, 1], [], []>} : vector<8x16xf32>, vector<16x64xf32>, vector<8x64xf32> -> vector<8x64xf32>
    %c0_3 = arith.constant 0 : index
    %c0_4 = arith.constant 0 : index
    %3 = vector.load %arg3[%c0_3, %c0_4] : memref<1x64xf32, #tpu.memory_space<vmem>>, vector<1x64xf32>
    %4 = vector.broadcast %3 : vector<1x64xf32> to vector<8x64xf32>
    %5 = arith.addf %2, %4 : vector<8x64xf32>
    %c0_5 = arith.constant 0 : index
    %c0_6 = arith.constant 0 : index
    %6 = vector.load %arg4[%c0_5, %c0_6] : memref<1x64xf32, #tpu.memory_space<vmem>>, vector<1x64xf32>
    %c0_7 = arith.constant 0 : index
    %c0_8 = arith.constant 0 : index
    %7 = vector.load %arg5[%c0_7, %c0_8] : memref<1x64xf32, #tpu.memory_space<vmem>>, vector<1x64xf32>
    %cst_9 = arith.constant dense<0.000000e+00> : vector<8xf32>
    %8 = vector.multi_reduction <add>, %5, %cst_9 [1] : vector<8x64xf32> to vector<8xf32>
    %9 = vector.shape_cast %8 : vector<8xf32> to vector<8x1xf32>
    %cst_10 = arith.constant 6.400000e+01 : f32
    %10 = vector.broadcast %cst_10 : f32 to vector<8x1xf32>
    %11 = arith.divf %9, %10 : vector<8x1xf32>
    %12 = vector.broadcast %11 : vector<8x1xf32> to vector<8x64xf32>
    %13 = arith.subf %5, %12 : vector<8x64xf32>
    %14 = arith.mulf %13, %13 : vector<8x64xf32>
    %cst_11 = arith.constant dense<0.000000e+00> : vector<8xf32>
    %15 = vector.multi_reduction <add>, %14, %cst_11 [1] : vector<8x64xf32> to vector<8xf32>
    %16 = vector.shape_cast %15 : vector<8xf32> to vector<8x1xf32>
    %cst_12 = arith.constant 6.400000e+01 : f32
    %17 = vector.broadcast %cst_12 : f32 to vector<8x1xf32>
    %18 = arith.divf %16, %17 : vector<8x1xf32>
    %cst_13 = arith.constant 9.99999974E-6 : f32
    %19 = vector.broadcast %cst_13 : f32 to vector<8x1xf32>
    %20 = arith.addf %18, %19 : vector<8x1xf32>
    %21 = math.rsqrt %20 : vector<8x1xf32>
    %22 = vector.broadcast %21 : vector<8x1xf32> to vector<8x64xf32>
    %23 = arith.mulf %13, %22 : vector<8x64xf32>
    %24 = vector.broadcast %6 : vector<1x64xf32> to vector<8x64xf32>
    %25 = arith.mulf %23, %24 : vector<8x64xf32>
    %26 = vector.broadcast %7 : vector<1x64xf32> to vector<8x64xf32>
    %27 = arith.addf %25, %26 : vector<8x64xf32>
    %cst_14 = arith.constant 0.000000e+00 : f32
    %28 = vector.broadcast %cst_14 : f32 to vector<8x64xf32>
    %29 = arith.maximumf %27, %28 : vector<8x64xf32>
    %c0_15 = arith.constant 0 : index
    %c0_16 = arith.constant 0 : index
    %30 = vector.load %arg6[%c0_15, %c0_16] : memref<64x32xf32, #tpu.memory_space<vmem>>, vector<64x32xf32>
    %cst_17 = arith.constant dense<0.000000e+00> : vector<8x32xf32>
    %31 = tpu.matmul %29, %30, %cst_17 {dimension_numbers = #tpu.dot_dimension_numbers<[1], [0], [0], [1], [0, 0, 1, 1], [], []>} : vector<8x64xf32>, vector<64x32xf32>, vector<8x32xf32> -> vector<8x32xf32>
    %c0_18 = arith.constant 0 : index
    %c0_19 = arith.constant 0 : index
    %32 = vector.load %arg7[%c0_18, %c0_19] : memref<1x32xf32, #tpu.memory_space<vmem>>, vector<1x32xf32>
    %33 = vector.broadcast %32 : vector<1x32xf32> to vector<8x32xf32>
    %34 = arith.addf %31, %33 : vector<8x32xf32>
    %c0_20 = arith.constant 0 : index
    %c0_21 = arith.constant 0 : index
    %35 = vector.load %arg8[%c0_20, %c0_21] : memref<1x32xf32, #tpu.memory_space<vmem>>, vector<1x32xf32>
    %c0_22 = arith.constant 0 : index
    %c0_23 = arith.constant 0 : index
    %36 = vector.load %arg9[%c0_22, %c0_23] : memref<1x32xf32, #tpu.memory_space<vmem>>, vector<1x32xf32>
    %cst_24 = arith.constant dense<0.000000e+00> : vector<8xf32>
    %37 = vector.multi_reduction <add>, %34, %cst_24 [1] : vector<8x32xf32> to vector<8xf32>
    %38 = vector.shape_cast %37 : vector<8xf32> to vector<8x1xf32>
    %cst_25 = arith.constant 3.200000e+01 : f32
    %39 = vector.broadcast %cst_25 : f32 to vector<8x1xf32>
    %40 = arith.divf %38, %39 : vector<8x1xf32>
    %41 = vector.broadcast %40 : vector<8x1xf32> to vector<8x32xf32>
    %42 = arith.subf %34, %41 : vector<8x32xf32>
    %43 = arith.mulf %42, %42 : vector<8x32xf32>
    %cst_26 = arith.constant dense<0.000000e+00> : vector<8xf32>
    %44 = vector.multi_reduction <add>, %43, %cst_26 [1] : vector<8x32xf32> to vector<8xf32>
    %45 = vector.shape_cast %44 : vector<8xf32> to vector<8x1xf32>
    %cst_27 = arith.constant 3.200000e+01 : f32
    %46 = vector.broadcast %cst_27 : f32 to vector<8x1xf32>
    %47 = arith.divf %45, %46 : vector<8x1xf32>
    %cst_28 = arith.constant 9.99999974E-6 : f32
    %48 = vector.broadcast %cst_28 : f32 to vector<8x1xf32>
    %49 = arith.addf %47, %48 : vector<8x1xf32>
    %50 = math.rsqrt %49 : vector<8x1xf32>
    %51 = vector.broadcast %50 : vector<8x1xf32> to vector<8x32xf32>
    %52 = arith.mulf %42, %51 : vector<8x32xf32>
    %53 = vector.broadcast %35 : vector<1x32xf32> to vector<8x32xf32>
    %54 = arith.mulf %52, %53 : vector<8x32xf32>
    %55 = vector.broadcast %36 : vector<1x32xf32> to vector<8x32xf32>
    %56 = arith.addf %54, %55 : vector<8x32xf32>
    %cst_29 = arith.constant 0.000000e+00 : f32
    %57 = vector.broadcast %cst_29 : f32 to vector<8x32xf32>
    %58 = arith.maximumf %56, %57 : vector<8x32xf32>
    %c0_30 = arith.constant 0 : index
    %c0_31 = arith.constant 0 : index
    %59 = vector.load %arg10[%c0_30, %c0_31] : memref<32x128xf32, #tpu.memory_space<vmem>>, vector<32x128xf32>
    %cst_32 = arith.constant dense<0.000000e+00> : vector<8x128xf32>
    %60 = tpu.matmul %58, %59, %cst_32 {dimension_numbers = #tpu.dot_dimension_numbers<[1], [0], [0], [1], [0, 0, 1, 1], [], []>} : vector<8x32xf32>, vector<32x128xf32>, vector<8x128xf32> -> vector<8x128xf32>
    %c0_33 = arith.constant 0 : index
    %c0_34 = arith.constant 0 : index
    %61 = vector.load %arg11[%c0_33, %c0_34] : memref<1x128xf32, #tpu.memory_space<vmem>>, vector<1x128xf32>
    %62 = vector.broadcast %61 : vector<1x128xf32> to vector<8x128xf32>
    %63 = arith.addf %60, %62 : vector<8x128xf32>
    %64 = math.tanh %63 : vector<8x128xf32>
    %c0_35 = arith.constant 0 : index
    %c0_36 = arith.constant 0 : index
    %65 = vector.load %arg12[%c0_35, %c0_36] : memref<8x128xf32, #tpu.memory_space<vmem>>, vector<8x128xf32>
    tpu.vector_store %arg12[%c0_35, %c0_36], %64 {strides = array<i32>} : memref<8x128xf32, #tpu.memory_space<vmem>>, vector<8x128xf32>,
    %c0_i32 = arith.constant 0 : i32
    %66 = arith.cmpi eq, %arg0, %c0_i32 : i32
    %67 = arith.extui %66 : i1 to i32
    %c0_i32_37 = arith.constant 0 : i32
    %68 = arith.cmpi ne, %67, %c0_i32_37 : i32
    scf.if %68 {
      %69 = vector.extract_strided_slice %64 {offsets = [7, 0], sizes = [1, 128], strides = [1, 1]} : vector<8x128xf32> to vector<1x128xf32>
      %cst_38 = arith.constant 6.000000e-01 : f32
      %70 = vector.broadcast %cst_38 : f32 to vector<1x128xf32>
      %71 = arith.mulf %69, %70 : vector<1x128xf32>
      %c7 = arith.constant 7 : index
      %c0_39 = arith.constant 0 : index
      %72 = vector.load %arg12[%c7, %c0_39] : memref<8x128xf32, #tpu.memory_space<vmem>>, vector<1x128xf32>
      tpu.vector_store %arg12[%c7, %c0_39], %71 {strides = array<i32>} : memref<8x128xf32, #tpu.memory_space<vmem>>, vector<1x128xf32>,
    } else {
    }
    return
  }
  func.func @transform_0(%arg0: i32) -> (i32, i32) {
    %c0_i32 = arith.constant 0 : i32
    %c0_i32_0 = arith.constant 0 : i32
    return %arg0, %c0_i32 : i32, i32
  }
  func.func @transform_1(%arg0: i32) -> (i32, i32) {
    %c0_i32 = arith.constant 0 : i32
    %c0_i32_0 = arith.constant 0 : i32
    %c0_i32_1 = arith.constant 0 : i32
    return %c0_i32, %c0_i32_0 : i32, i32
  }
  func.func @transform_2(%arg0: i32) -> (i32, i32) {
    %c0_i32 = arith.constant 0 : i32
    %c0_i32_0 = arith.constant 0 : i32
    %c0_i32_1 = arith.constant 0 : i32
    return %c0_i32, %c0_i32_0 : i32, i32
  }
  func.func @transform_3(%arg0: i32) -> (i32, i32) {
    %c0_i32 = arith.constant 0 : i32
    %c0_i32_0 = arith.constant 0 : i32
    %c0_i32_1 = arith.constant 0 : i32
    return %c0_i32, %c0_i32_0 : i32, i32
  }
  func.func @transform_4(%arg0: i32) -> (i32, i32) {
    %c0_i32 = arith.constant 0 : i32
    %c0_i32_0 = arith.constant 0 : i32
    %c0_i32_1 = arith.constant 0 : i32
    return %c0_i32, %c0_i32_0 : i32, i32
  }
  func.func @transform_5(%arg0: i32) -> (i32, i32) {
    %c0_i32 = arith.constant 0 : i32
    %c0_i32_0 = arith.constant 0 : i32
    %c0_i32_1 = arith.constant 0 : i32
    return %c0_i32, %c0_i32_0 : i32, i32
  }
  func.func @transform_6(%arg0: i32) -> (i32, i32) {
    %c0_i32 = arith.constant 0 : i32
    %c0_i32_0 = arith.constant 0 : i32
    %c0_i32_1 = arith.constant 0 : i32
    return %c0_i32, %c0_i32_0 : i32, i32
  }
  func.func @transform_7(%arg0: i32) -> (i32, i32) {
    %c0_i32 = arith.constant 0 : i32
    %c0_i32_0 = arith.constant 0 : i32
    %c0_i32_1 = arith.constant 0 : i32
    return %c0_i32, %c0_i32_0 : i32, i32
  }
  func.func @transform_8(%arg0: i32) -> (i32, i32) {
    %c0_i32 = arith.constant 0 : i32
    %c0_i32_0 = arith.constant 0 : i32
    %c0_i32_1 = arith.constant 0 : i32
    return %c0_i32, %c0_i32_0 : i32, i32
  }
  func.func @transform_9(%arg0: i32) -> (i32, i32) {
    %c0_i32 = arith.constant 0 : i32
    %c0_i32_0 = arith.constant 0 : i32
    %c0_i32_1 = arith.constant 0 : i32
    return %c0_i32, %c0_i32_0 : i32, i32
  }
  func.func @transform_10(%arg0: i32) -> (i32, i32) {
    %c0_i32 = arith.constant 0 : i32
    %c0_i32_0 = arith.constant 0 : i32
    %c0_i32_1 = arith.constant 0 : i32
    return %c0_i32, %c0_i32_0 : i32, i32
  }
  func.func @transform_11(%arg0: i32) -> (i32, i32) {
    %c0_i32 = arith.constant 0 : i32
    %c0_i32_0 = arith.constant 0 : i32
    return %arg0, %c0_i32 : i32, i32
  }
}

</mosaic_0001>

<llo_original>
// kernel: actor_forward.1
$region0: #{actor_forward.1}
  #allocation0 [shape = 'u32[]', space=smem, size = 0x4, offset = 0x4, fixed_abs, tag = 'smem constant byte address 0x4 - core index']
  #allocation1 [shape = 'u32[144,128]{1,0:T(1,128)}', space=vmem, size = 0x12000, scoped, tag = 'internal scratch']
  %s0 = inlined_call_operand.vmem [shape: f32[8,16], index: 0, kind: input, shape index: {}]
  %s1 = inlined_call_operand.vmem [shape: f32[16,64], index: 1, kind: input, shape index: {}]
  %s2 = inlined_call_operand.vmem [shape: f32[1,64], index: 2, kind: input, shape index: {}]
  %s3 = inlined_call_operand.vmem [shape: f32[1,64], index: 3, kind: input, shape index: {}]
  %s4 = inlined_call_operand.vmem [shape: f32[1,64], index: 4, kind: input, shape index: {}]
  %s5 = inlined_call_operand.vmem [shape: f32[64,32], index: 5, kind: input, shape index: {}]
  %s6 = inlined_call_operand.vmem [shape: f32[1,32], index: 6, kind: input, shape index: {}]
  %s7 = inlined_call_operand.vmem [shape: f32[1,32], index: 7, kind: input, shape index: {}]
  %s8 = inlined_call_operand.vmem [shape: f32[1,32], index: 8, kind: input, shape index: {}]
  %s9 = inlined_call_operand.vmem [shape: f32[32,128], index: 9, kind: input, shape index: {}]
  %s10 = inlined_call_operand.vmem [shape: f32[1,128], index: 10, kind: input, shape index: {}]
  %s11 = inlined_call_operand.hbm [shape: f32[8,128], index: 11, kind: output, shape index: {}]
  %s12 = sld [smem:[#allocation0]]
  $region58: #{actor_forward.1} parent=0
    _
  %s14 = ssub.s32 1, %s12
  %s15 = scalar_select 0, %s14, %s12
  $region1: #{actor_forward.1} parent=0
    #allocation2 [shape = 'u8[4096]{0}', space=vmem, size = 0x1000, scoped, tag = 'output window, operand 0, single buffered']
    #allocation3 [shape = 's32[1]{0}', space=sflag, size = 0x4, scoped, tag = 'scoped memory for actor_forward.1']
    %16 = vsyncpa [#allocation3], 0
    // Predicated region
    $region2: #{actor_forward.1} parent=1 // pred_check
      _
    $region3: #{actor_forward.1} parent=1 // pred_check_branch
      %18 = sbr.rel (0) target = $region5
    $region4: #{actor_forward.1} parent=1 // pred_region
      _
    $region5: #{actor_forward.1} parent=1 // pred_fallthru
      _
    // Predicated region
    $region6: #{actor_forward.1} parent=1 // pred_check
      _
    $region7: #{actor_forward.1} parent=1 // pred_check_branch
      %20 = sbr.rel (0) target = $region9
    $region8: #{actor_forward.1} parent=1 // pred_region
      _
    $region9: #{actor_forward.1} parent=1 // pred_fallthru
      _
    // Predicated region
    $region10: #{actor_forward.1} parent=1 // pred_check
      _
    $region11: #{actor_forward.1} parent=1 // pred_check_branch
      %22 = sbr.rel (0) target = $region13
    $region12: #{actor_forward.1} parent=1 // pred_region
      _
    $region13: #{actor_forward.1} parent=1 // pred_fallthru
      _
    // Predicated region
    $region14: #{actor_forward.1} parent=1 // pred_check
      _
    $region15: #{actor_forward.1} parent=1 // pred_check_branch
      %24 = sbr.rel (0) target = $region17
    $region16: #{actor_forward.1} parent=1 // pred_region
      _
    $region17: #{actor_forward.1} parent=1 // pred_fallthru
      _
    // Predicated region
    $region18: #{actor_forward.1} parent=1 // pred_check
      _
    $region19: #{actor_forward.1} parent=1 // pred_check_branch
      %26 = sbr.rel (0) target = $region21
    $region20: #{actor_forward.1} parent=1 // pred_region
      _
    $region21: #{actor_forward.1} parent=1 // pred_fallthru
      _
    // Predicated region
    $region22: #{actor_forward.1} parent=1 // pred_check
      _
    $region23: #{actor_forward.1} parent=1 // pred_check_branch
      %28 = sbr.rel (0) target = $region25
    $region24: #{actor_forward.1} parent=1 // pred_region
      _
    $region25: #{actor_forward.1} parent=1 // pred_fallthru
      _
    // Predicated region
    $region26: #{actor_forward.1} parent=1 // pred_check
      _
    $region27: #{actor_forward.1} parent=1 // pred_check_branch
      %30 = sbr.rel (0) target = $region29
    $region28: #{actor_forward.1} parent=1 // pred_region
      _
    $region29: #{actor_forward.1} parent=1 // pred_fallthru
      _
    // Predicated region
    $region30: #{actor_forward.1} parent=1 // pred_check
      _
    $region31: #{actor_forward.1} parent=1 // pred_check_branch
      %32 = sbr.rel (0) target = $region33
    $region32: #{actor_forward.1} parent=1 // pred_region
      _
    $region33: #{actor_forward.1} parent=1 // pred_fallthru
      _
    // Predicated region
    $region34: #{actor_forward.1} parent=1 // pred_check
      _
    $region35: #{actor_forward.1} parent=1 // pred_check_branch
      %34 = sbr.rel (0) target = $region37
    $region36: #{actor_forward.1} parent=1 // pred_region
      _
    $region37: #{actor_forward.1} parent=1 // pred_fallthru
      _
    // Predicated region
    $region38: #{actor_forward.1} parent=1 // pred_check
      _
    $region39: #{actor_forward.1} parent=1 // pred_check_branch
      %36 = sbr.rel (0) target = $region41
    $region40: #{actor_forward.1} parent=1 // pred_region
      _
    $region41: #{actor_forward.1} parent=1 // pred_fallthru
      _
    // Predicated region
    $region42: #{actor_forward.1} parent=1 // pred_check
      _
    $region43: #{actor_forward.1} parent=1 // pred_check_branch
      %38 = sbr.rel (0) target = $region45
    $region44: #{actor_forward.1} parent=1 // pred_region
      _
    $region45: #{actor_forward.1} parent=1 // pred_fallthru
      _
    %v39 = vld [vmem:[%s0] sm:$0xff]
    %v40 = vld [vmem:[%s1] sm:$0xff]
    %v41 = vld [vmem:[%s1 + $0x8] sm:$0xff]
    %v42 = vld [vmem:[%s2] sm:$0x1]
    %v44 = vlaneseq
    %v45 = vshrl.u32 %v44, 7
    %v46 = vsub.s32 0, %v45
    %v47 = vrot.slane %v42, %v46
    %vm49 = vcmask 130048
    %v51 = vsel %vm49, %v39, 0
    %53 = vmatprep.subr.mxu0 0.0
    %54 = vmatpush1.msra.mxu0 %v40
    %55 = vmatprep.subr.mxu0 0.0
    %56 = vmatpush1.msra.mxu0 %v41
    %57 = vmatprep.subr.mxu0 0.0
    %58 = vmatpush1.msra.mxu0 0.0
    %59 = vmatprep.subr.mxu0 0.0
    %60 = vmatpush1.msra.mxu0 0.0
    %61 = vmatprep.subr.mxu0 0.0
    %62 = vmatpush1.msra.mxu0 0.0
    %63 = vmatprep.subr.mxu0 0.0
    %64 = vmatpush1.msra.mxu0 0.0
    %65 = vmatprep.subr.mxu0 0.0
    %66 = vmatpush1.msra.mxu0 0.0
    %67 = vmatprep.subr.mxu0 0.0
    %68 = vmatpush1.msra.mxu0 0.0
    %69 = vmatprep.subr.mxu0 0.0
    %70 = vmatpush1.msra.mxu0 0.0
    %71 = vmatprep.subr.mxu0 0.0
    %72 = vmatpush1.msra.mxu0 0.0
    %73 = vmatprep.subr.mxu0 0.0
    %74 = vmatpush1.msra.mxu0 0.0
    %75 = vmatprep.subr.mxu0 0.0
    %76 = vmatpush1.msra.mxu0 0.0
    %77 = vmatprep.subr.mxu0 0.0
    %78 = vmatpush1.msra.mxu0 0.0
    %79 = vmatprep.subr.mxu0 0.0
    %80 = vmatpush1.msra.mxu0 0.0
    %81 = vmatprep.subr.mxu0 0.0
    %82 = vmatpush1.msra.mxu0 0.0
    %83 = vmatprep.subr.mxu0 0.0
    %84 = vmatpush1.msra.mxu0 0.0
    %85 = vmatprep.subr.mxu0 0.0
    %86 = vmatpush1.msra.mxu0 0.0
    %87 = vmatprep.subr.mxu0 0.0
    %88 = vmatpush1.msra.mxu0 0.0
    %89 = vmatprep.subr.mxu0 0.0
    %90 = vmatpush1.msra.mxu0 0.0
    %91 = vmatprep.subr.mxu0 0.0
    %92 = vmatpush1.msra.mxu0 0.0
    %93 = vmatprep.subr.mxu0 0.0
    %94 = vmatpush1.msra.mxu0 0.0
    %95 = vmatprep.subr.mxu0 0.0
    %96 = vmatpush1.msra.mxu0 0.0
    %97 = vmatprep.subr.mxu0 0.0
    %98 = vmatpush1.msra.mxu0 0.0
    %99 = vmatprep.subr.mxu0 0.0
    %100 = vmatpush1.msra.mxu0 0.0
    %101 = vmatprep.subr.mxu0 0.0
    %102 = vmatpush1.msra.mxu0 0.0
    %103 = vmatprep.subr.mxu0 0.0
    %104 = vmatpush1.msra.mxu0 0.0
    %105 = vmatprep.subr.mxu0 0.0
    %106 = vmatpush1.msra.mxu0 0.0
    %107 = vmatprep.subr.mxu0 0.0
    %108 = vmatpush1.msra.mxu0 0.0
    %109 = vmatprep.subr.mxu0 0.0
    %110 = vmatpush1.msra.mxu0 0.0
    %111 = vmatprep.subr.mxu0 0.0
    %112 = vmatpush1.msra.mxu0 0.0
    %113 = vmatprep.subr.mxu0 0.0
    %114 = vmatpush1.msra.mxu0 0.0
    %115 = vmatprep.subr.mxu0 0.0
    %116 = vmatpush1.msra.mxu0 0.0
    %117 = vmatprep.mubr.f32.mxu0 0.0
    %118 = vmatmul.mubr.f32.gmra.mrb[0].mxu0 %v51
    %v119 = vpop.f32.mrb[0].mxu0
    %v120 = vadd.f32 %v47, %v119
    %v121 = vpop.f32.mrb[0].mxu0
    %122 = vdwg.mxu0
    %v123 = vld [vmem:[%s3] sm:$0x1]
    %v124 = vld [vmem:[%s4] sm:$0x1]
    %vm125 = vcmask 523264
    %v126 = vsel %vm125, %v120, 0.0
    %127 = vadd.xlane.f32.xlu0 %v126
    %v128 = vpop.xlane.xlu0 %127
    %v129 = vrcp.pop 64.0
    %v130 = vmul.f32 %v128, %v129
    %v131 = vsub.f32 %v120, %v130
    %v132 = vmul.f32 %v131, %v131
    %v133 = vsel %vm125, %v132, 0.0
    %134 = vadd.xlane.f32.xlu0 %v133
    %v135 = vpop.xlane.xlu0 %134
    %v136 = vmul.f32 %v135, %v129
    %v137 = vadd.f32 %v136, 1e-05
    %v138 = vrsqrt.pop %v137
    %v139 = vmul.f32 %v131, %v138
    %v141 = vlaneseq
    %v142 = vshrl.u32 %v141, 7
    %v143 = vsub.s32 0, %v142
    %v144 = vrot.slane %v123, %v143
    %v146 = vmul.f32 %v139, %v144
    %v148 = vlaneseq
    %v149 = vshrl.u32 %v148, 7
    %v150 = vsub.s32 0, %v149
    %v151 = vrot.slane %v124, %v150
    %v153 = vadd.f32 %v146, %v151
    %v154 = vmax.f32 %v153, 0.0
    %v155 = vld [vmem:[%s5] sm:$0xff]
    %v156 = vld [vmem:[%s5 + $0x8] sm:$0xff]
    %v157 = vld [vmem:[%s5 + $0x10] sm:$0xff]
    %v158 = vld [vmem:[%s5 + $0x18] sm:$0xff]
    %v159 = vld [vmem:[%s5 + $0x20] sm:$0xff]
    %v160 = vld [vmem:[%s5 + $0x28] sm:$0xff]
    %v161 = vld [vmem:[%s5 + $0x30] sm:$0xff]
    %v162 = vld [vmem:[%s5 + $0x38] sm:$0xff]
    %v163 = vld [vmem:[%s6] sm:$0x1]
    %v165 = vlaneseq
    %v166 = vshrl.u32 %v165, 7
    %v167 = vsub.s32 0, %v166
    %v168 = vrot.slane %v163, %v167
    %v171 = vsel %vm125, %v154, 0
    %173 = vmatprep.subr.mxu0 0.0
    %174 = vmatpush1.msra.mxu0 %v155
    %175 = vmatprep.subr.mxu0 0.0
    %176 = vmatpush1.msra.mxu0 %v156
    %177 = vmatprep.subr.mxu0 0.0
    %178 = vmatpush1.msra.mxu0 %v157
    %179 = vmatprep.subr.mxu0 0.0
    %180 = vmatpush1.msra.mxu0 %v158
    %181 = vmatprep.subr.mxu0 0.0
    %182 = vmatpush1.msra.mxu0 %v159
    %183 = vmatprep.subr.mxu0 0.0
    %184 = vmatpush1.msra.mxu0 %v160
    %185 = vmatprep.subr.mxu0 0.0
    %186 = vmatpush1.msra.mxu0 %v161
    %187 = vmatprep.subr.mxu0 0.0
    %188 = vmatpush1.msra.mxu0 %v162
    %189 = vmatprep.subr.mxu0 0.0
    %190 = vmatpush1.msra.mxu0 0.0
    %191 = vmatprep.subr.mxu0 0.0
    %192 = vmatpush1.msra.mxu0 0.0
    %193 = vmatprep.subr.mxu0 0.0
    %194 = vmatpush1.msra.mxu0 0.0
    %195 = vmatprep.subr.mxu0 0.0
    %196 = vmatpush1.msra.mxu0 0.0
    %197 = vmatprep.subr.mxu0 0.0
    %198 = vmatpush1.msra.mxu0 0.0
    %199 = vmatprep.subr.mxu0 0.0
    %200 = vmatpush1.msra.mxu0 0.0
    %201 = vmatprep.subr.mxu0 0.0
    %202 = vmatpush1.msra.mxu0 0.0
    %203 = vmatprep.subr.mxu0 0.0
    %204 = vmatpush1.msra.mxu0 0.0
    %205 = vmatprep.subr.mxu0 0.0
    %206 = vmatpush1.msra.mxu0 0.0
    %207 = vmatprep.subr.mxu0 0.0
    %208 = vmatpush1.msra.mxu0 0.0
    %209 = vmatprep.subr.mxu0 0.0
    %210 = vmatpush1.msra.mxu0 0.0
    %211 = vmatprep.subr.mxu0 0.0
    %212 = vmatpush1.msra.mxu0 0.0
    %213 = vmatprep.subr.mxu0 0.0
    %214 = vmatpush1.msra.mxu0 0.0
    %215 = vmatprep.subr.mxu0 0.0
    %216 = vmatpush1.msra.mxu0 0.0
    %217 = vmatprep.subr.mxu0 0.0
    %218 = vmatpush1.msra.mxu0 0.0
    %219 = vmatprep.subr.mxu0 0.0
    %220 = vmatpush1.msra.mxu0 0.0
    %221 = vmatprep.subr.mxu0 0.0
    %222 = vmatpush1.msra.mxu0 0.0
    %223 = vmatprep.subr.mxu0 0.0
    %224 = vmatpush1.msra.mxu0 0.0
    %225 = vmatprep.subr.mxu0 0.0
    %226 = vmatpush1.msra.mxu0 0.0
    %227 = vmatprep.subr.mxu0 0.0
    %228 = vmatpush1.msra.mxu0 0.0
    %229 = vmatprep.subr.mxu0 0.0
    %230 = vmatpush1.msra.mxu0 0.0
    %231 = vmatprep.subr.mxu0 0.0
    %232 = vmatpush1.msra.mxu0 0.0
    %233 = vmatprep.subr.mxu0 0.0
    %234 = vmatpush1.msra.mxu0 0.0
    %235 = vmatprep.subr.mxu0 0.0
    %236 = vmatpush1.msra.mxu0 0.0
    %237 = vmatprep.mubr.f32.mxu0 0.0
    %238 = vmatmul.mubr.f32.gmra.mrb[0].mxu0 %v171
    %v239 = vpop.f32.mrb[0].mxu0
    %v240 = vadd.f32 %v168, %v239
    %v241 = vpop.f32.mrb[0].mxu0
    %242 = vdwg.mxu0
    %v243 = vld [vmem:[%s7] sm:$0x1]
    %v244 = vld [vmem:[%s8] sm:$0x1]
    %vm245 = vcmask 261120
    %v246 = vsel %vm245, %v240, 0.0
    %247 = vadd.xlane.f32.xlu0 %v246
    %v248 = vpop.xlane.xlu0 %247
    %v249 = vrcp.pop 32.0
    %v250 = vmul.f32 %v248, %v249
    %v251 = vsub.f32 %v240, %v250
    %v252 = vmul.f32 %v251, %v251
    %v253 = vsel %vm245, %v252, 0.0
    %254 = vadd.xlane.f32.xlu0 %v253
    %v255 = vpop.xlane.xlu0 %254
    %v256 = vmul.f32 %v255, %v249
    %v257 = vadd.f32 %v256, 1e-05
    %v258 = vrsqrt.pop %v257
    %v259 = vmul.f32 %v251, %v258
    %v261 = vlaneseq
    %v262 = vshrl.u32 %v261, 7
    %v263 = vsub.s32 0, %v262
    %v264 = vrot.slane %v243, %v263
    %v266 = vmul.f32 %v259, %v264
    %v268 = vlaneseq
    %v269 = vshrl.u32 %v268, 7
    %v270 = vsub.s32 0, %v269
    %v271 = vrot.slane %v244, %v270
    %v273 = vadd.f32 %v266, %v271
    %v274 = vmax.f32 %v273, 0.0
    %v275 = vld [vmem:[%s9] sm:$0xff]
    %v276 = vld [vmem:[%s9 + $0x8] sm:$0xff]
    %v277 = vld [vmem:[%s9 + $0x10] sm:$0xff]
    %v278 = vld [vmem:[%s9 + $0x18] sm:$0xff]
    %v279 = vld [vmem:[%s10] sm:$0x1]
    %v281 = vlaneseq
    %v282 = vshrl.u32 %v281, 7
    %v283 = vsub.s32 0, %v282
    %v284 = vrot.slane %v279, %v283
    %v287 = vsel %vm245, %v274, 0
    %289 = vmatprep.subr.mxu0 0.0
    %290 = vmatpush1.msra.mxu0 %v275
    %291 = vmatprep.subr.mxu0 0.0
    %292 = vmatpush1.msra.mxu0 %v276
    %293 = vmatprep.subr.mxu0 0.0
    %294 = vmatpush1.msra.mxu0 %v277
    %295 = vmatprep.subr.mxu0 0.0
    %296 = vmatpush1.msra.mxu0 %v278
    %297 = vmatprep.subr.mxu0 0.0
    %298 = vmatpush1.msra.mxu0 0.0
    %299 = vmatprep.subr.mxu0 0.0
    %300 = vmatpush1.msra.mxu0 0.0
    %301 = vmatprep.subr.mxu0 0.0
    %302 = vmatpush1.msra.mxu0 0.0
    %303 = vmatprep.subr.mxu0 0.0
    %304 = vmatpush1.msra.mxu0 0.0
    %305 = vmatprep.subr.mxu0 0.0
    %306 = vmatpush1.msra.mxu0 0.0
    %307 = vmatprep.subr.mxu0 0.0
    %308 = vmatpush1.msra.mxu0 0.0
    %309 = vmatprep.subr.mxu0 0.0
    %310 = vmatpush1.msra.mxu0 0.0
    %311 = vmatprep.subr.mxu0 0.0
    %312 = vmatpush1.msra.mxu0 0.0
    %313 = vmatprep.subr.mxu0 0.0
    %314 = vmatpush1.msra.mxu0 0.0
    %315 = vmatprep.subr.mxu0 0.0
    %316 = vmatpush1.msra.mxu0 0.0
    %317 = vmatprep.subr.mxu0 0.0
    %318 = vmatpush1.msra.mxu0 0.0
    %319 = vmatprep.subr.mxu0 0.0
    %320 = vmatpush1.msra.mxu0 0.0
    %321 = vmatprep.subr.mxu0 0.0
    %322 = vmatpush1.msra.mxu0 0.0
    %323 = vmatprep.subr.mxu0 0.0
    %324 = vmatpush1.msra.mxu0 0.0
    %325 = vmatprep.subr.mxu0 0.0
    %326 = vmatpush1.msra.mxu0 0.0
    %327 = vmatprep.subr.mxu0 0.0
    %328 = vmatpush1.msra.mxu0 0.0
    %329 = vmatprep.subr.mxu0 0.0
    %330 = vmatpush1.msra.mxu0 0.0
    %331 = vmatprep.subr.mxu0 0.0
    %332 = vmatpush1.msra.mxu0 0.0
    %333 = vmatprep.subr.mxu0 0.0
    %334 = vmatpush1.msra.mxu0 0.0
    %335 = vmatprep.subr.mxu0 0.0
    %336 = vmatpush1.msra.mxu0 0.0
    %337 = vmatprep.subr.mxu0 0.0
    %338 = vmatpush1.msra.mxu0 0.0
    %339 = vmatprep.subr.mxu0 0.0
    %340 = vmatpush1.msra.mxu0 0.0
    %341 = vmatprep.subr.mxu0 0.0
    %342 = vmatpush1.msra.mxu0 0.0
    %343 = vmatprep.subr.mxu0 0.0
    %344 = vmatpush1.msra.mxu0 0.0
    %345 = vmatprep.subr.mxu0 0.0
    %346 = vmatpush1.msra.mxu0 0.0
    %347 = vmatprep.subr.mxu0 0.0
    %348 = vmatpush1.msra.mxu0 0.0
    %349 = vmatprep.subr.mxu0 0.0
    %350 = vmatpush1.msra.mxu0 0.0
    %351 = vmatprep.subr.mxu0 0.0
    %352 = vmatpush1.msra.mxu0 0.0
    %353 = vmatprep.mubr.f32.mxu0 0.0
    %354 = vmatmul.mubr.f32.gmra.mrb[0].mxu0 %v287
    %v355 = vpop.f32.mrb[0].mxu0
    %v356 = vadd.f32 %v284, %v355
    %v357 = vpop.f32.mrb[0].mxu0
    %358 = vdwg.mxu0
    %v359 = vtanh.pop %v356
    %360 = vst [vmem:[#allocation2] sm:$0xff] %v359
    %p361 = scmp.eq.s32.totalorder 0, 0
    // Predicated region
    $region46: #{actor_forward.1} parent=1 // pred_check
      %p362 = pneg %p361
    $region47: #{actor_forward.1} parent=1 // pred_check_branch
      %364 = sbr.rel (%p362) target = $region49
    $region48: #{actor_forward.1} parent=1 // pred_region
      %v365 = vmul.f32 %v359, 0.6
      %366 = vst [vmem:[#allocation2] sm:$0x80] %v365
    $region49: #{actor_forward.1} parent=1 // pred_fallthru
      _
    // Predicated region
    $region50: #{actor_forward.1} parent=1 // pred_check
      _
    $region51: #{actor_forward.1} parent=1 // pred_check_branch
      %368 = sbr.rel (0) target = $region53
    $region52: #{actor_forward.1} parent=1 // pred_region
      %s370 = ssub.s32 128, 128
      %371 = vsyncadd [#allocation3], %s370
      %s373 = sshll.u32 [#allocation2], 4
      %s374 = int_to_ptr.vmem [resolvable:$true] %s373
      %376 = dma.vmem_to_hbm [thread:$0]  %s374, 128, %s11, [#allocation3]
    $region53: #{actor_forward.1} parent=1 // pred_fallthru
      _
    // Predicated region
    $region54: #{actor_forward.1} parent=1 // pred_check
      _
    $region55: #{actor_forward.1} parent=1 // pred_check_branch
      %378 = sbr.rel (0) target = $region57
    $region56: #{actor_forward.1} parent=1 // pred_region
      %379 = dma.done [#allocation3], 128
    $region57: #{actor_forward.1} parent=1 // pred_fallthru
      _
    %380 = vsyncpa [#allocation3], 1

</llo_original>
